<compile_context>
chip_gen: v7x
topology: tpu7x:2x2x1
jax: 0.10.0
libtpu: 0.0.40
codegen_flags: <defaults>
</compile_context>

<pallas_src>
import functools

import jax
import jax.numpy as jnp
from jax.experimental import pallas as pl
from jax.experimental.pallas import tpu as pltpu


def _round_up(x, m):
    return (x + m - 1) // m * m


# ------------------------------ Pallas kernel ---------------------------------
def _adv_head_kernel(x_ref, w1_ref, b1_ref, w2_ref, b2_ref, out_ref):
    """One batch tile: out = tanh(x @ W1 + b1) @ W2 + b2.

    W1/b1/W2/b2 have constant index_maps, so they stay VMEM-resident across
    grid steps; only the x / out tiles stream (double-buffered by the Pallas
    pipeline).  Matmuls run with bf16 operands on the MXU (f32 accumulation);
    x is cast in-kernel on the VPU so the wrapper never rewrites x in HBM.
    """
    x = x_ref[...].astype(w1_ref.dtype)                       # bf16 MXU operand
    h = jnp.dot(x, w1_ref[...], preferred_element_type=jnp.float32)
    h = h + b1_ref[...]                                       # f32 bias add
    # tanh in the compute dtype: bf16 EUP on v6e/v7x (~2x the f32 rate); Mosaic
    # upcasts on v5e (no bf16 EUP) — still correct, just not faster there.
    h = jnp.tanh(h.astype(w2_ref.dtype))
    pred = jnp.dot(h, w2_ref[...], preferred_element_type=jnp.float32)
    out_ref[...] = (pred + b2_ref[...]).astype(out_ref.dtype)


# ------------------------------ pallas_call wrapper ---------------------------
def adv_head_pallas(x, w1, b1, w2, b2, *, batch_tile=512):
    """pred = tanh(x @ W1 + b1) @ W2 + b2 for lane-dense (128-padded) operands.

    x:  [B, Fp]   (any float dtype; cast to W1's dtype inside the kernel)
    w1: [Fp, Fp]  (bf16 by default — see prepare_params)
    b1: [1, Fp]   f32
    w2: [Fp, Ap]  (bf16 by default)
    b2: [1, Ap]   f32
    returns [B, Ap] f32
    """
    B, Fp = x.shape
    Ap = w2.shape[1]
    assert w1.shape == (Fp, Fp) and b1.shape == (1, Fp)
    assert w2.shape[0] == Fp and b2.shape == (1, Ap)

    # Batch tiling: B <= 256 -> single full-extent block (legal for any B);
    # otherwise MXU-M-aligned (multiple-of-256) tiles, at least 2 of them so
    # both v7x TensorCores get work.  A non-divisible last tile overhangs and
    # Pallas masks the out-of-range output rows — no batch-pad HBM round-trip.
    if B <= 256:
        tm = B
    else:
        tm = min(_round_up(batch_tile, 256), _round_up(pl.cdiv(B, 2), 256))
    grid = (pl.cdiv(B, tm),)

    x_bytes = jnp.dtype(x.dtype).itemsize
    w_bytes = jnp.dtype(w1.dtype).itemsize

    # VMEM budget: resident weights/biases (assume 2x buffering worst case),
    # double-buffered x/out tiles, clamped to the chip's physical VMEM
    # (v7x: 64 MiB per TensorCore; v5e/v6e: 128 MiB).
    needed = (2 * (Fp * Fp + Fp * Ap) * w_bytes
              + 2 * (Fp + Ap) * 4
              + 2 * tm * Fp * x_bytes
              + 2 * tm * Ap * 4
              + (2 << 20))
    try:
        vmem_cap = int(pltpu.get_tpu_info().vmem_capacity_bytes)
    except Exception:  # info query unavailable -> assume the smallest (v7x) VMEM
        vmem_cap = 64 * 1024 * 1024
    vmem_limit = int(min(max(needed, 16 * 1024 * 1024), vmem_cap - (8 << 20)))
    # TODO(synk): for very large Fp (resident W1 no longer fits in VMEM), add a
    # trailing "arbitrary" K grid axis streaming W1 in (tk, Fp) slabs into an
    # f32 accumulator, with bias+tanh+2nd matmul under pl.when(k == last).

    cost = pl.CostEstimate(
        flops=2 * B * Fp * Fp + 2 * B * Fp * Ap,
        transcendentals=B * Fp,
        bytes_accessed=(B * Fp * x_bytes + (Fp * Fp + Fp * Ap) * w_bytes
                        + (Fp + Ap) * 4 + B * Ap * 4),
    )

    return pl.pallas_call(
        _adv_head_kernel,
        out_shape=jax.ShapeDtypeStruct((B, Ap), jnp.float32),
        grid=grid,
        in_specs=[
            pl.BlockSpec((tm, Fp), lambda i: (i, 0)),        # x tile (streams)
            # Constant index_map => blocks are revisited (weights stay resident).
            # TODO(synk): pipeline_mode=pl.Buffered(1) on these four specs would
            # halve their VMEM footprint for very large Fp.
            pl.BlockSpec((Fp, Fp), lambda i: (0, 0)),        # W1 (resident)
            pl.BlockSpec((1, Fp), lambda i: (0, 0)),         # b1 (resident)
            pl.BlockSpec((Fp, Ap), lambda i: (0, 0)),        # W2 (resident, lane-padded)
            pl.BlockSpec((1, Ap), lambda i: (0, 0)),         # b2 (resident, lane-padded)
        ],
        out_specs=pl.BlockSpec((tm, Ap), lambda i: (i, 0)),
        compiler_params=pltpu.CompilerParams(
            dimension_semantics=("parallel",),   # batch tiles across v7x's 2 TCs
            vmem_limit_bytes=vmem_limit,
        ),
        cost_estimate=cost,
    )(x, w1, b1, w2, b2)


# --- differentiable wrapper (adversarial training goes through rev_grad) ------
@jax.custom_vjp
def adv_head(x, w1, b1, w2, b2):
    return adv_head_pallas(x, w1, b1, w2, b2)


def _adv_head_fwd(x, w1, b1, w2, b2):
    return adv_head_pallas(x, w1, b1, w2, b2), (x, w1, b1, w2)


def _adv_head_bwd(res, g):
    # TODO(synk): backward as Pallas kernels; plain-JAX backward (f32 math on the
    # prepared/padded params) keeps adversarial training correct.
    x, w1, b1, w2 = res
    x32 = x.astype(jnp.float32)
    w1f = w1.astype(jnp.float32)
    w2f = w2.astype(jnp.float32)
    g32 = g.astype(jnp.float32)
    h = jnp.tanh(x32 @ w1f + b1)
    dh = (g32 @ w2f.T) * (1.0 - h * h)
    dx = (dh @ w1f.T).astype(x.dtype)
    dw1 = (x32.T @ dh).astype(w1.dtype)
    db1 = jnp.sum(dh, axis=0, keepdims=True).astype(b1.dtype)
    dw2 = (h.T @ g32).astype(w2.dtype)
    db2 = jnp.sum(g32, axis=0, keepdims=True).astype(jnp.float32)
    return dx, dw1, db1, dw2, db2


adv_head.defvjp(_adv_head_fwd, _adv_head_bwd)


# --- gradient reversal layer (identity in forward) -----------------------------
@functools.partial(jax.custom_vjp, nondiff_argnums=(1,))
def rev_grad(x, strength):
    return x


def _rev_grad_fwd(x, strength):
    return x, None


def _rev_grad_bwd(strength, _, g):
    return (-strength * g,)


rev_grad.defvjp(_rev_grad_fwd, _rev_grad_bwd)


# ------------------------------ parameters ------------------------------------
def init_params(key, feat_dim, attr_dim):
    """Parameter init mimicking PyTorch nn.Linear's U(-1/sqrt(fan_in), +) init."""
    k1, k2, k3, k4 = jax.random.split(key, 4)
    bound = 1.0 / jnp.sqrt(feat_dim)
    w1 = jax.random.uniform(k1, (feat_dim, feat_dim), jnp.float32, -bound, bound)
    b1 = jax.random.uniform(k2, (1, feat_dim), jnp.float32, -bound, bound)
    w2 = jax.random.uniform(k3, (feat_dim, attr_dim), jnp.float32, -bound, bound)
    b2 = jax.random.uniform(k4, (1, attr_dim), jnp.float32, -bound, bound)
    return {"w1": w1, "b1": b1, "w2": w2, "b2": b2}


def prepare_params(params, compute_dtype=jnp.bfloat16):
    """One-time prep for the kernel: pad feat/attr dims up to multiples of 128
    (lane-dense operands & unmasked stores) and cast matmul operands to the MXU
    compute dtype (bf16 default; pass None for an f32-parity path).  Hoisted out
    of the per-call path so static weights are never re-padded/re-cast in HBM."""
    w1, b1, w2, b2 = params["w1"], params["b1"], params["w2"], params["b2"]
    feat_dim, attr_dim = w1.shape[0], w2.shape[1]
    fp = _round_up(feat_dim, 128)
    ap = _round_up(max(attr_dim, 1), 128)
    cdt = jnp.float32 if compute_dtype is None else compute_dtype
    return {
        "w1": jnp.pad(w1, ((0, fp - feat_dim), (0, fp - feat_dim))).astype(cdt),
        "b1": jnp.pad(b1, ((0, 0), (0, fp - feat_dim))).astype(jnp.float32),
        "w2": jnp.pad(w2, ((0, fp - feat_dim), (0, ap - attr_dim))).astype(cdt),
        "b2": jnp.pad(b2, ((0, 0), (0, ap - attr_dim))).astype(jnp.float32),
        "feat_dim": feat_dim,
        "attr_dim": attr_dim,
    }


def adversarial_classifier_head_forward(hidden, prepared, do_rev_grad,
                                        adv_grad_rev_strength=1.0):
    """AdversarialClassifierHead.forward (hidden_layer_num=1, adv_dropout=None)."""
    # TODO(synk): adv_dropout (nn.Dropout) branch and hidden_layer_num > 1 not
    # implemented; the module defaults (None, 1) make this the exact forward.
    if do_rev_grad:
        hidden = rev_grad(hidden, adv_grad_rev_strength)
    fp = prepared["w1"].shape[0]
    if hidden.shape[1] != fp:            # lane-pad x only when feat_dim % 128 != 0
        hidden = jnp.pad(hidden, ((0, 0), (0, fp - hidden.shape[1])))
    pred = adv_head(hidden, prepared["w1"], prepared["b1"],
                    prepared["w2"], prepared["b2"])
    return pred[:, :prepared["attr_dim"]]


# ----------------------------------- demo -------------------------------------
if __name__ == "__main__":
    B, FEAT_DIM, ATTR_DIM = 8, 32, 4
    key = jax.random.PRNGKey(0)
    k_x, k_p = jax.random.split(key)

    hidden = jax.random.normal(k_x, (B, FEAT_DIM), jnp.float32)
    params = init_params(k_p, FEAT_DIM, ATTR_DIM)

    ref = jnp.tanh(hidden @ params["w1"] + params["b1"]) @ params["w2"] + params["b2"]

    # 1) default bf16 fast path (with gradient-reversal layer, identity in fwd)
    prepared_bf16 = prepare_params(params)                    # bf16 MXU operands
    pred = adversarial_classifier_head_forward(
        hidden, prepared_bf16, do_rev_grad=True, adv_grad_rev_strength=0.5)
    pred = jax.block_until_ready(pred)
    assert pred.shape == (B, ATTR_DIM)
    assert jnp.allclose(pred, ref, atol=5e-2, rtol=5e-2)

    # 2) f32-parity path (compute_dtype=None) against the pure-JAX reference
    prepared_f32 = prepare_params(params, compute_dtype=None)
    pred32 = jax.block_until_ready(
        adversarial_classifier_head_forward(hidden, prepared_f32, do_rev_grad=False))
    assert jnp.allclose(pred32, ref, atol=1e-5, rtol=1e-5)

    # 3) backward / rev_grad check (custom VJP path, bf16 weights)
    def loss_pallas(h):
        return adversarial_classifier_head_forward(h, prepared_bf16, True, 0.5).sum()

    def loss_ref(h):
        return (jnp.tanh(h @ params["w1"] + params["b1"]) @ params["w2"]
                + params["b2"]).sum()

    g_pallas = jax.block_until_ready(jax.grad(loss_pallas)(hidden))
    g_ref = -0.5 * jax.grad(loss_ref)(hidden)
    assert jnp.allclose(g_pallas, g_ref, atol=5e-2, rtol=5e-2)

    print("KERNEL_OK")
</pallas_src>

<mosaic_0001>
module attributes {stable_mosaic.version = 11 : i64} {
  func.func @_adv_head_kernel(%arg0: i32, %arg1: memref<8x128xf32, #tpu.memory_space<vmem>>, %arg2: memref<128x128xbf16, #tpu.memory_space<vmem>>, %arg3: memref<1x128xf32, #tpu.memory_space<vmem>>, %arg4: memref<128x128xbf16, #tpu.memory_space<vmem>>, %arg5: memref<1x128xf32, #tpu.memory_space<vmem>>, %arg6: memref<8x128xf32, #tpu.memory_space<vmem>>) attributes {dimension_semantics = [#tpu.dimension_semantics<parallel>], iteration_bounds = array<i64: 1>, scalar_prefetch = 0 : i64, scratch_operands = 0 : i64, tpu.core_type = #tpu.core_type<tc>, window_params = [{transform_indices = @transform_0, window_bounds = array<i64: 8, 128>}, {pipeline_mode = #tpu.pipeline_mode<synchronous>, transform_indices = @transform_1, window_bounds = array<i64: 128, 128>}, {pipeline_mode = #tpu.pipeline_mode<synchronous>, transform_indices = @transform_2, window_bounds = array<i64: 1, 128>}, {pipeline_mode = #tpu.pipeline_mode<synchronous>, transform_indices = @transform_3, window_bounds = array<i64: 128, 128>}, {pipeline_mode = #tpu.pipeline_mode<synchronous>, transform_indices = @transform_4, window_bounds = array<i64: 1, 128>}, {transform_indices = @transform_5, window_bounds = array<i64: 8, 128>}]} {
    %c0 = arith.constant 0 : index
    %c0_0 = arith.constant 0 : index
    %0 = vector.load %arg1[%c0, %c0_0] : memref<8x128xf32, #tpu.memory_space<vmem>>, vector<8x128xf32>
    %1 = arith.truncf %0 : vector<8x128xf32> to vector<8x128xbf16>
    %c0_1 = arith.constant 0 : index
    %c0_2 = arith.constant 0 : index
    %2 = vector.load %arg2[%c0_1, %c0_2] : memref<128x128xbf16, #tpu.memory_space<vmem>>, vector<128x128xbf16>
    %cst = arith.constant dense<0.000000e+00> : vector<8x128xf32>
    %3 = tpu.matmul %1, %2, %cst {dimension_numbers = #tpu.dot_dimension_numbers<[1], [0], [0], [1], [0, 0, 1, 1], [], []>} : vector<8x128xbf16>, vector<128x128xbf16>, vector<8x128xf32> -> vector<8x128xf32>
    %c0_3 = arith.constant 0 : index
    %c0_4 = arith.constant 0 : index
    %4 = vector.load %arg3[%c0_3, %c0_4] : memref<1x128xf32, #tpu.memory_space<vmem>>, vector<1x128xf32>
    %5 = vector.broadcast %4 : vector<1x128xf32> to vector<8x128xf32>
    %6 = arith.addf %3, %5 : vector<8x128xf32>
    %7 = arith.truncf %6 : vector<8x128xf32> to vector<8x128xbf16>
    %8 = math.tanh %7 : vector<8x128xbf16>
    %c0_5 = arith.constant 0 : index
    %c0_6 = arith.constant 0 : index
    %9 = vector.load %arg4[%c0_5, %c0_6] : memref<128x128xbf16, #tpu.memory_space<vmem>>, vector<128x128xbf16>
    %cst_7 = arith.constant dense<0.000000e+00> : vector<8x128xf32>
    %10 = tpu.matmul %8, %9, %cst_7 {dimension_numbers = #tpu.dot_dimension_numbers<[1], [0], [0], [1], [0, 0, 1, 1], [], []>} : vector<8x128xbf16>, vector<128x128xbf16>, vector<8x128xf32> -> vector<8x128xf32>
    %c0_8 = arith.constant 0 : index
    %c0_9 = arith.constant 0 : index
    %11 = vector.load %arg5[%c0_8, %c0_9] : memref<1x128xf32, #tpu.memory_space<vmem>>, vector<1x128xf32>
    %12 = vector.broadcast %11 : vector<1x128xf32> to vector<8x128xf32>
    %13 = arith.addf %10, %12 : vector<8x128xf32>
    %c0_10 = arith.constant 0 : index
    %c0_11 = arith.constant 0 : index
    %14 = vector.load %arg6[%c0_10, %c0_11] : memref<8x128xf32, #tpu.memory_space<vmem>>, vector<8x128xf32>
    tpu.vector_store %arg6[%c0_10, %c0_11], %13 {strides = array<i32>} : memref<8x128xf32, #tpu.memory_space<vmem>>, vector<8x128xf32>,
    return
  }
  func.func @transform_0(%arg0: i32) -> (i32, i32) {
    %c0_i32 = arith.constant 0 : i32
    %c0_i32_0 = arith.constant 0 : i32
    return %arg0, %c0_i32 : i32, i32
  }
  func.func @transform_1(%arg0: i32) -> (i32, i32) {
    %c0_i32 = arith.constant 0 : i32
    %c0_i32_0 = arith.constant 0 : i32
    %c0_i32_1 = arith.constant 0 : i32
    return %c0_i32, %c0_i32_0 : i32, i32
  }
  func.func @transform_2(%arg0: i32) -> (i32, i32) {
    %c0_i32 = arith.constant 0 : i32
    %c0_i32_0 = arith.constant 0 : i32
    %c0_i32_1 = arith.constant 0 : i32
    return %c0_i32, %c0_i32_0 : i32, i32
  }
  func.func @transform_3(%arg0: i32) -> (i32, i32) {
    %c0_i32 = arith.constant 0 : i32
    %c0_i32_0 = arith.constant 0 : i32
    %c0_i32_1 = arith.constant 0 : i32
    return %c0_i32, %c0_i32_0 : i32, i32
  }
  func.func @transform_4(%arg0: i32) -> (i32, i32) {
    %c0_i32 = arith.constant 0 : i32
    %c0_i32_0 = arith.constant 0 : i32
    %c0_i32_1 = arith.constant 0 : i32
    return %c0_i32, %c0_i32_0 : i32, i32
  }
  func.func @transform_5(%arg0: i32) -> (i32, i32) {
    %c0_i32 = arith.constant 0 : i32
    %c0_i32_0 = arith.constant 0 : i32
    return %arg0, %c0_i32 : i32, i32
  }
}

</mosaic_0001>

<llo_original>
// kernel: tpu_custom_call.1
$region0: #{tpu_custom_call.1}
  #allocation0 [shape = 'u32[]', space=smem, size = 0x4, offset = 0x4, fixed_abs, tag = 'smem constant byte address 0x4 - core index']
  #allocation1 [shape = 'u32[144,128]{1,0:T(1,128)}', space=vmem, size = 0x12000, scoped, tag = 'internal scratch']
  %s0 = inlined_call_operand.hbm [shape: f32[8,128], index: 0, kind: input, shape index: {}]
  %s1 = inlined_call_operand.hbm [shape: bf16[128,128], index: 1, kind: input, shape index: {}]
  %s2 = inlined_call_operand.vmem [shape: f32[1,128], index: 2, kind: input, shape index: {}]
  %s3 = inlined_call_operand.hbm [shape: bf16[128,128], index: 3, kind: input, shape index: {}]
  %s4 = inlined_call_operand.vmem [shape: f32[1,128], index: 4, kind: input, shape index: {}]
  %s5 = inlined_call_operand.hbm [shape: f32[8,128], index: 5, kind: output, shape index: {}]
  %s6 = sld [smem:[#allocation0]]
  $region42: #{tpu_custom_call.1} parent=0
    _
  %s8 = ssub.s32 1, %s6
  %s9 = scalar_select 0, %s8, %s6
  $region1: #{tpu_custom_call.1} parent=0
    #allocation2 [shape = 'u8[4096]{0}', space=vmem, size = 0x1000, scoped, tag = 'input window, operand 0, single buffered']
    #allocation3 [shape = 's32[1]{0}', space=sflag, size = 0x4, scoped, tag = 'scoped memory for tpu_custom_call.1']
    #allocation4 [shape = 's32[1]{0}', space=sflag, size = 0x4, scoped, tag = 'scoped memory for tpu_custom_call.1']
    #allocation5 [shape = 'u8[32768]{0}', space=vmem, size = 0x8000, scoped, tag = 'input window, operand 1, single buffered']
    #allocation6 [shape = 's32[1]{0}', space=sflag, size = 0x4, scoped, tag = 'scoped memory for tpu_custom_call.1']
    #allocation7 [shape = 'u8[32768]{0}', space=vmem, size = 0x8000, scoped, tag = 'input window, operand 3, single buffered']
    #allocation8 [shape = 'u8[4096]{0}', space=vmem, size = 0x1000, scoped, tag = 'output window, operand 0, single buffered']
    %10 = vsyncpa [#allocation3], 0
    %11 = vsyncpa [#allocation6], 0
    %12 = vsyncpa [#allocation4], 0
    // Predicated region
    $region2: #{tpu_custom_call.1} parent=1 // pred_check
      _
    $region3: #{tpu_custom_call.1} parent=1 // pred_check_branch
      %14 = sbr.rel (0) target = $region5
    $region4: #{tpu_custom_call.1} parent=1 // pred_region
      %s16 = ssub.s32 128, 128
      %17 = vsyncadd [#allocation3], %s16
      %s19 = sshll.u32 [#allocation2], 4
      %s20 = int_to_ptr.vmem [resolvable:$true] %s19
      %22 = dma.hbm_to_vmem [thread:$0]  %s0, 128, %s20, [#allocation3]
    $region5: #{tpu_custom_call.1} parent=1 // pred_fallthru
      _
    // Predicated region
    $region6: #{tpu_custom_call.1} parent=1 // pred_check
      _
    $region7: #{tpu_custom_call.1} parent=1 // pred_check_branch
      %24 = sbr.rel (0) target = $region9
    $region8: #{tpu_custom_call.1} parent=1 // pred_region
      %s26 = ssub.s32 1024, 1024
      %27 = vsyncadd [#allocation6], %s26
      %s28 = sshll.u32 [#allocation5], 4
      %s29 = int_to_ptr.vmem [resolvable:$true] %s28
      %34 = dma.hbm_to_vmem [thread:$0]  %s1, 1024, %s29, [#allocation6], 64, 64, 4
    $region9: #{tpu_custom_call.1} parent=1 // pred_fallthru
      _
    // Predicated region
    $region10: #{tpu_custom_call.1} parent=1 // pred_check
      _
    $region11: #{tpu_custom_call.1} parent=1 // pred_check_branch
      %36 = sbr.rel (0) target = $region13
    $region12: #{tpu_custom_call.1} parent=1 // pred_region
      _
    $region13: #{tpu_custom_call.1} parent=1 // pred_fallthru
      _
    // Predicated region
    $region14: #{tpu_custom_call.1} parent=1 // pred_check
      _
    $region15: #{tpu_custom_call.1} parent=1 // pred_check_branch
      %38 = sbr.rel (0) target = $region17
    $region16: #{tpu_custom_call.1} parent=1 // pred_region
      %s40 = ssub.s32 1024, 1024
      %41 = vsyncadd [#allocation6], %s40
      %s42 = sshll.u32 [#allocation7], 4
      %s43 = int_to_ptr.vmem [resolvable:$true] %s42
      %48 = dma.hbm_to_vmem [thread:$0]  %s3, 1024, %s43, [#allocation6], 64, 64, 4
    $region17: #{tpu_custom_call.1} parent=1 // pred_fallthru
      _
    // Predicated region
    $region18: #{tpu_custom_call.1} parent=1 // pred_check
      _
    $region19: #{tpu_custom_call.1} parent=1 // pred_check_branch
      %50 = sbr.rel (0) target = $region21
    $region20: #{tpu_custom_call.1} parent=1 // pred_region
      _
    $region21: #{tpu_custom_call.1} parent=1 // pred_fallthru
      _
    // Predicated region
    $region22: #{tpu_custom_call.1} parent=1 // pred_check
      _
    $region23: #{tpu_custom_call.1} parent=1 // pred_check_branch
      %52 = sbr.rel (0) target = $region25
    $region24: #{tpu_custom_call.1} parent=1 // pred_region
      %53 = dma.done [#allocation3], 128
    $region25: #{tpu_custom_call.1} parent=1 // pred_fallthru
      _
    // Predicated region
    $region26: #{tpu_custom_call.1} parent=1 // pred_check
      _
    $region27: #{tpu_custom_call.1} parent=1 // pred_check_branch
      %55 = sbr.rel (0) target = $region29
    $region28: #{tpu_custom_call.1} parent=1 // pred_region
      %56 = dma.done [#allocation6], 1024
    $region29: #{tpu_custom_call.1} parent=1 // pred_fallthru
      _
    // Predicated region
    $region30: #{tpu_custom_call.1} parent=1 // pred_check
      _
    $region31: #{tpu_custom_call.1} parent=1 // pred_check_branch
      %58 = sbr.rel (0) target = $region33
    $region32: #{tpu_custom_call.1} parent=1 // pred_region
      %59 = dma.done [#allocation6], 1024
    $region33: #{tpu_custom_call.1} parent=1 // pred_fallthru
      _
    %v61 = vld [vmem:[#allocation2] sm:$0xff]
    %v62 = vpack.c.bf16 %v61, %v61
    %v63 = vld [vmem:[#allocation5] sm:$0xf]
    %v64 = vld [vmem:[#allocation5 + $0x4] sm:$0xf]
    %v65 = vld [vmem:[#allocation5 + $0x8] sm:$0xf]
    %v66 = vld [vmem:[#allocation5 + $0xc] sm:$0xf]
    %v67 = vld [vmem:[#allocation5 + $0x10] sm:$0xf]
    %v68 = vld [vmem:[#allocation5 + $0x14] sm:$0xf]
    %v69 = vld [vmem:[#allocation5 + $0x18] sm:$0xf]
    %v70 = vld [vmem:[#allocation5 + $0x1c] sm:$0xf]
    %v71 = vld [vmem:[#allocation5 + $0x20] sm:$0xf]
    %v72 = vld [vmem:[#allocation5 + $0x24] sm:$0xf]
    %v73 = vld [vmem:[#allocation5 + $0x28] sm:$0xf]
    %v74 = vld [vmem:[#allocation5 + $0x2c] sm:$0xf]
    %v75 = vld [vmem:[#allocation5 + $0x30] sm:$0xf]
    %v76 = vld [vmem:[#allocation5 + $0x34] sm:$0xf]
    %v77 = vld [vmem:[#allocation5 + $0x38] sm:$0xf]
    %v78 = vld [vmem:[#allocation5 + $0x3c] sm:$0xf]
    %v79 = vld [vmem:[%s2] sm:$0x1]
    %v81 = vlaneseq
    %v82 = vshrl.u32 %v81, 7
    %v83 = vsub.s32 0, %v82
    %v84 = vrot.slane %v79, %v83
    %v102 = vunpack.c.l.b16 %v63
    %v103 = vunpack.c.l.b16 %v64
    %v104 = vunpack.c.l.b16 %v65
    %v105 = vunpack.c.l.b16 %v66
    %v106 = vunpack.c.l.b16 %v67
    %v107 = vunpack.c.l.b16 %v68
    %v108 = vunpack.c.l.b16 %v69
    %v109 = vunpack.c.l.b16 %v70
    %v110 = vunpack.c.l.b16 %v71
    %v111 = vunpack.c.l.b16 %v72
    %v112 = vunpack.c.l.b16 %v73
    %v113 = vunpack.c.l.b16 %v74
    %v114 = vunpack.c.l.b16 %v75
    %v115 = vunpack.c.l.b16 %v76
    %v116 = vunpack.c.l.b16 %v77
    %v117 = vunpack.c.l.b16 %v78
    %v118 = vpack.c.b16 %v103, %v102
    %v119 = vpack.c.b16 %v105, %v104
    %v120 = vpack.c.b16 %v107, %v106
    %v121 = vpack.c.b16 %v109, %v108
    %v122 = vpack.c.b16 %v111, %v110
    %v123 = vpack.c.b16 %v113, %v112
    %v124 = vpack.c.b16 %v115, %v114
    %v125 = vpack.c.b16 %v117, %v116
    %134 = vmatprep.subr.bf16.mxu0 0
    %135 = vmatpush1.bf16.msra.mxu0 %v118
    %136 = vmatprep.subr.bf16.mxu0 0
    %137 = vmatpush1.bf16.msra.mxu0 %v119
    %138 = vmatprep.subr.bf16.mxu0 0
    %139 = vmatpush1.bf16.msra.mxu0 %v120
    %140 = vmatprep.subr.bf16.mxu0 0
    %141 = vmatpush1.bf16.msra.mxu0 %v121
    %142 = vmatprep.subr.bf16.mxu0 0
    %143 = vmatpush1.bf16.msra.mxu0 %v122
    %144 = vmatprep.subr.bf16.mxu0 0
    %145 = vmatpush1.bf16.msra.mxu0 %v123
    %146 = vmatprep.subr.bf16.mxu0 0
    %147 = vmatpush1.bf16.msra.mxu0 %v124
    %148 = vmatprep.subr.bf16.mxu0 0
    %149 = vmatpush1.bf16.msra.mxu0 %v125
    %150 = vmatprep.subr.bf16.mxu0 0
    %151 = vmatpush1.bf16.msra.mxu0 0
    %152 = vmatprep.subr.bf16.mxu0 0
    %153 = vmatpush1.bf16.msra.mxu0 0
    %154 = vmatprep.subr.bf16.mxu0 0
    %155 = vmatpush1.bf16.msra.mxu0 0
    %156 = vmatprep.subr.bf16.mxu0 0
    %157 = vmatpush1.bf16.msra.mxu0 0
    %158 = vmatprep.subr.bf16.mxu0 0
    %159 = vmatpush1.bf16.msra.mxu0 0
    %160 = vmatprep.subr.bf16.mxu0 0
    %161 = vmatpush1.bf16.msra.mxu0 0
    %162 = vmatprep.subr.bf16.mxu0 0
    %163 = vmatpush1.bf16.msra.mxu0 0
    %164 = vmatprep.subr.bf16.mxu0 0
    %165 = vmatpush1.bf16.msra.mxu0 0
    %166 = vmatprep.mubr.bf16.mxu0 0
    %167 = vmatmul.mubr.bf16.gmra.mrb[0].mxu0 %v62
    %v168 = vpop.f32.mrb[0].mxu0
    %v169 = vadd.f32 %v84, %v168
    %v170 = vpop.f32.mrb[0].mxu0
    %v171 = vpop.f32.mrb[0].mxu0
    %v172 = vpop.f32.mrb[0].mxu0
    %173 = vdwg.mxu0
    %v174 = vpack.c.bf16 %v169, %v169
    %v175 = vtanh.bf16.pop %v174
    %v176 = vld [vmem:[#allocation7] sm:$0xf]
    %v177 = vld [vmem:[#allocation7 + $0x4] sm:$0xf]
    %v178 = vld [vmem:[#allocation7 + $0x8] sm:$0xf]
    %v179 = vld [vmem:[#allocation7 + $0xc] sm:$0xf]
    %v180 = vld [vmem:[#allocation7 + $0x10] sm:$0xf]
    %v181 = vld [vmem:[#allocation7 + $0x14] sm:$0xf]
    %v182 = vld [vmem:[#allocation7 + $0x18] sm:$0xf]
    %v183 = vld [vmem:[#allocation7 + $0x1c] sm:$0xf]
    %v184 = vld [vmem:[#allocation7 + $0x20] sm:$0xf]
    %v185 = vld [vmem:[#allocation7 + $0x24] sm:$0xf]
    %v186 = vld [vmem:[#allocation7 + $0x28] sm:$0xf]
    %v187 = vld [vmem:[#allocation7 + $0x2c] sm:$0xf]
    %v188 = vld [vmem:[#allocation7 + $0x30] sm:$0xf]
    %v189 = vld [vmem:[#allocation7 + $0x34] sm:$0xf]
    %v190 = vld [vmem:[#allocation7 + $0x38] sm:$0xf]
    %v191 = vld [vmem:[#allocation7 + $0x3c] sm:$0xf]
    %v192 = vld [vmem:[%s4] sm:$0x1]
    %v194 = vlaneseq
    %v195 = vshrl.u32 %v194, 7
    %v196 = vsub.s32 0, %v195
    %v197 = vrot.slane %v192, %v196
    %v215 = vunpack.c.l.b16 %v176
    %v216 = vunpack.c.l.b16 %v177
    %v217 = vunpack.c.l.b16 %v178
    %v218 = vunpack.c.l.b16 %v179
    %v219 = vunpack.c.l.b16 %v180
    %v220 = vunpack.c.l.b16 %v181
    %v221 = vunpack.c.l.b16 %v182
    %v222 = vunpack.c.l.b16 %v183
    %v223 = vunpack.c.l.b16 %v184
    %v224 = vunpack.c.l.b16 %v185
    %v225 = vunpack.c.l.b16 %v186
    %v226 = vunpack.c.l.b16 %v187
    %v227 = vunpack.c.l.b16 %v188
    %v228 = vunpack.c.l.b16 %v189
    %v229 = vunpack.c.l.b16 %v190
    %v230 = vunpack.c.l.b16 %v191
    %v231 = vpack.c.b16 %v216, %v215
    %v232 = vpack.c.b16 %v218, %v217
    %v233 = vpack.c.b16 %v220, %v219
    %v234 = vpack.c.b16 %v222, %v221
    %v235 = vpack.c.b16 %v224, %v223
    %v236 = vpack.c.b16 %v226, %v225
    %v237 = vpack.c.b16 %v228, %v227
    %v238 = vpack.c.b16 %v230, %v229
    %247 = vmatprep.subr.bf16.mxu0 0
    %248 = vmatpush1.bf16.msra.mxu0 %v231
    %249 = vmatprep.subr.bf16.mxu0 0
    %250 = vmatpush1.bf16.msra.mxu0 %v232
    %251 = vmatprep.subr.bf16.mxu0 0
    %252 = vmatpush1.bf16.msra.mxu0 %v233
    %253 = vmatprep.subr.bf16.mxu0 0
    %254 = vmatpush1.bf16.msra.mxu0 %v234
    %255 = vmatprep.subr.bf16.mxu0 0
    %256 = vmatpush1.bf16.msra.mxu0 %v235
    %257 = vmatprep.subr.bf16.mxu0 0
    %258 = vmatpush1.bf16.msra.mxu0 %v236
    %259 = vmatprep.subr.bf16.mxu0 0
    %260 = vmatpush1.bf16.msra.mxu0 %v237
    %261 = vmatprep.subr.bf16.mxu0 0
    %262 = vmatpush1.bf16.msra.mxu0 %v238
    %263 = vmatprep.subr.bf16.mxu0 0
    %264 = vmatpush1.bf16.msra.mxu0 0
    %265 = vmatprep.subr.bf16.mxu0 0
    %266 = vmatpush1.bf16.msra.mxu0 0
    %267 = vmatprep.subr.bf16.mxu0 0
    %268 = vmatpush1.bf16.msra.mxu0 0
    %269 = vmatprep.subr.bf16.mxu0 0
    %270 = vmatpush1.bf16.msra.mxu0 0
    %271 = vmatprep.subr.bf16.mxu0 0
    %272 = vmatpush1.bf16.msra.mxu0 0
    %273 = vmatprep.subr.bf16.mxu0 0
    %274 = vmatpush1.bf16.msra.mxu0 0
    %275 = vmatprep.subr.bf16.mxu0 0
    %276 = vmatpush1.bf16.msra.mxu0 0
    %277 = vmatprep.subr.bf16.mxu0 0
    %278 = vmatpush1.bf16.msra.mxu0 0
    %279 = vmatprep.mubr.bf16.mxu0 0
    %280 = vmatmul.mubr.bf16.gmra.mrb[0].mxu0 %v175
    %v281 = vpop.f32.mrb[0].mxu0
    %v282 = vadd.f32 %v197, %v281
    %v283 = vpop.f32.mrb[0].mxu0
    %v284 = vpop.f32.mrb[0].mxu0
    %v285 = vpop.f32.mrb[0].mxu0
    %286 = vdwg.mxu0
    %287 = vst [vmem:[#allocation8] sm:$0xff] %v282
    // Predicated region
    $region34: #{tpu_custom_call.1} parent=1 // pred_check
      _
    $region35: #{tpu_custom_call.1} parent=1 // pred_check_branch
      %289 = sbr.rel (0) target = $region37
    $region36: #{tpu_custom_call.1} parent=1 // pred_region
      %s291 = ssub.s32 128, 128
      %292 = vsyncadd [#allocation4], %s291
      %s294 = sshll.u32 [#allocation8], 4
      %s295 = int_to_ptr.vmem [resolvable:$true] %s294
      %297 = dma.vmem_to_hbm [thread:$0]  %s295, 128, %s5, [#allocation4]
    $region37: #{tpu_custom_call.1} parent=1 // pred_fallthru
      _
    // Predicated region
    $region38: #{tpu_custom_call.1} parent=1 // pred_check
      _
    $region39: #{tpu_custom_call.1} parent=1 // pred_check_branch
      %299 = sbr.rel (0) target = $region41
    $region40: #{tpu_custom_call.1} parent=1 // pred_region
      %300 = dma.done [#allocation4], 128
    $region41: #{tpu_custom_call.1} parent=1 // pred_fallthru
      _
    %301 = vsyncpa [#allocation3], 1
    %302 = vsyncpa [#allocation6], 1
    %303 = vsyncpa [#allocation4], 1

</llo_original>
